<compile_context>
chip_gen: v7x
topology: tpu7x:2x2x1
jax: 0.10.0
libtpu: 0.0.40
codegen_flags: <defaults>
</compile_context>

<pallas_src>
import functools

import numpy as np

import jax
import jax.numpy as jnp
from jax.experimental import pallas as pl
from jax.experimental.pallas import tpu as pltpu

GROWTH = 8
NUM_DENSE_LAYERS = 3
INIT_CH = 2 * GROWTH
KSIZE = 3
C_TOTAL = INIT_CH + NUM_DENSE_LAYERS * GROWTH  # 40
BN_EPS = 1e-5


# ------------------------------ fused kernel --------------------------------

def _fused_densenet_kernel(
    x_ref, mprev_ref, mnext_ref,
    stem_w_ref, stem_b_ref,
    bn0_ref, w0_ref, b0_ref,
    bn1_ref, w1_ref, b1_ref,
    bn2_ref, w2_ref, b2_ref,
    bnf_ref, head_w_ref, head_b_ref,
    out_ref,
    *, seq_len,
):
    f32 = jnp.float32
    bf16 = jnp.bfloat16
    m_prev = mprev_ref[...]          # (M, 1) f32: 0 where row % L == 0
    m_next = mnext_ref[...]          # (M, 1) f32: 0 where row % L == L-1

    def conv3(z, w_ref, b_ref):
        # z: (M, C_in) f32; w_ref: (3*C_in, C_TOTAL) bf16 (taps stacked along K).
        # The row shift is a cheap XLU roll + VPU mask instead of an (M,M) matmul.
        m = z.shape[0]
        z_prev = pltpu.roll(z, 1, axis=0) * m_prev          # z[r-1], 0 at block start
        z_next = pltpu.roll(z, m - 1, axis=0) * m_next      # z[r+1], 0 at block end
        z3 = jnp.concatenate([z_prev, z, z_next], axis=1).astype(bf16)
        return jnp.dot(z3, w_ref[...], preferred_element_type=f32) + b_ref[...]

    def bn_relu(f, bn_ref):
        bn = bn_ref[...]             # (2, C_TOTAL) f32: row0 = scale, row1 = shift
        return jnp.maximum(f * bn[0:1, :] + bn[1:2, :], 0.0)

    # stem conv (writes channels [0, INIT_CH); rest of the 40-wide slab stays zero)
    feats = conv3(x_ref[...], stem_w_ref, stem_b_ref)       # (M, C_TOTAL) f32

    # dense block: BN -> ReLU -> conv; DenseNet "concat" realized as add into the
    # pre-sized slab (each conv only writes its GROWTH-channel slice).
    for bn_ref, w_ref, b_ref in ((bn0_ref, w0_ref, b0_ref),
                                 (bn1_ref, w1_ref, b1_ref),
                                 (bn2_ref, w2_ref, b2_ref)):
        feats = feats + conv3(bn_relu(feats, bn_ref), w_ref, b_ref)

    # tail: final BN-ReLU -> global mean pool (reshape + sublane reduce) -> heads
    zf = bn_relu(feats, bnf_ref)                             # (M, C_TOTAL) f32
    tb = zf.shape[0] // seq_len
    pooled = jnp.sum(zf.reshape(tb, seq_len, zf.shape[1]), axis=1) * (1.0 / seq_len)
    out_ref[...] = (jnp.dot(pooled.astype(bf16), head_w_ref[...],
                            preferred_element_type=f32)
                    + head_b_ref[...])


# --------------------------- host-side helpers -------------------------------

def _pick_batch_tile(b, l, max_rows=4096):
    """Rows per grid step.  Large tiles amortize the ~0.35us per-step overhead;
    when the batch allows an 8-aligned split we still prefer >=2 grid steps so
    the "parallel" axis can shard across v7x's two TensorCores."""
    cap = max(1, max_rows // l)
    tb = b
    if b * l > max_rows:
        tb = next((t for t in range(min(b, cap), 0, -1)
                   if b % t == 0 and t % 8 == 0), b)
    if tb == b and b % 2 == 0 and (b // 2) % 8 == 0 and (b // 2) * l >= 256:
        tb = b // 2
    return tb


def _boundary_masks(batch_tile, l):
    """Per-row masks that stop the rolled taps from leaking across batch elements."""
    m = batch_tile * l
    r = np.arange(m)
    mprev = (r % l != 0).astype(np.float32).reshape(m, 1)       # row has a predecessor
    mnext = (r % l != l - 1).astype(np.float32).reshape(m, 1)   # row has a successor
    return mprev, mnext


def _pack_params(params, input_dim, output_dims):
    """Fold BN stats, stack the 3 conv taps along K, pad into the 40-wide slab layout."""
    f32, bf16 = jnp.float32, jnp.bfloat16
    packed = {}

    # stem: Conv1d(input_dim -> INIT_CH, k=3); torch weight layout (Cout, Cin, K).
    w = params["conv0_w"].astype(f32)
    wt = jnp.transpose(w, (2, 1, 0))                            # (K, Cin, INIT_CH)
    sw = jnp.zeros((KSIZE * input_dim, C_TOTAL), f32)
    for s in range(KSIZE):
        sw = sw.at[s * input_dim:(s + 1) * input_dim, :INIT_CH].set(wt[s])
    packed["stem_w"] = sw.astype(bf16)                          # (3*Cin, C_TOTAL)
    packed["stem_b"] = jnp.zeros((1, C_TOTAL), f32).at[
        0, :INIT_CH].set(params["conv0_b"].astype(f32))

    ch = INIT_CH
    for i in range(NUM_DENSE_LAYERS):
        scale = params[f"bn{i}_gamma"] / jnp.sqrt(params[f"bn{i}_var"] + BN_EPS)
        shift = params[f"bn{i}_beta"] - params[f"bn{i}_mean"] * scale
        bn = jnp.zeros((2, C_TOTAL), f32)
        bn = bn.at[0, :ch].set(scale.astype(f32)).at[1, :ch].set(shift.astype(f32))
        packed[f"bn{i}"] = bn

        w = params[f"conv{i + 1}_w"].astype(f32)                # (GROWTH, ch, K)
        wt = jnp.transpose(w, (2, 1, 0))                        # (K, ch, GROWTH)
        off = INIT_CH + i * GROWTH
        lw = jnp.zeros((KSIZE * C_TOTAL, C_TOTAL), f32)
        for s in range(KSIZE):
            lw = lw.at[s * C_TOTAL:s * C_TOTAL + ch, off:off + GROWTH].set(wt[s])
        packed[f"w{i}"] = lw.astype(bf16)                       # (3*C_TOTAL, C_TOTAL)
        packed[f"b{i}"] = jnp.zeros((1, C_TOTAL), f32).at[
            0, off:off + GROWTH].set(params[f"conv{i + 1}_b"].astype(f32))
        ch += GROWTH

    scale = params["bnf_gamma"] / jnp.sqrt(params["bnf_var"] + BN_EPS)
    shift = params["bnf_beta"] - params["bnf_mean"] * scale
    packed["bnf"] = jnp.stack([scale, shift], axis=0).astype(f32)        # (2, C_TOTAL)

    packed["head_w"] = jnp.concatenate(
        [params[f"head{j}_w"].astype(f32).T for j in range(len(output_dims))],
        axis=1).astype(bf16)                                             # (C_TOTAL, sum_d)
    packed["head_b"] = jnp.concatenate(
        [params[f"head{j}_b"].astype(f32) for j in range(len(output_dims))]).reshape(1, -1)
    return packed


def _whole_spec(arr):
    return pl.BlockSpec(arr.shape, lambda i, nd=arr.ndim: (0,) * nd)


# --------------------------- parameters / forward ----------------------------

def init_params(key, input_dim, output_dims):
    """Deterministic synthetic parameters matching the PyTorch module's shapes."""
    params = {}

    def nrm(k, shape, scale=0.1):
        return scale * jax.random.normal(k, shape, dtype=jnp.float32)

    keys = iter(jax.random.split(key, 128))
    params["conv0_w"] = nrm(next(keys), (INIT_CH, input_dim, KSIZE))
    params["conv0_b"] = nrm(next(keys), (INIT_CH,))

    ch = INIT_CH
    for i in range(NUM_DENSE_LAYERS):
        params[f"bn{i}_gamma"] = 1.0 + nrm(next(keys), (ch,))
        params[f"bn{i}_beta"] = nrm(next(keys), (ch,))
        params[f"bn{i}_mean"] = nrm(next(keys), (ch,))
        params[f"bn{i}_var"] = 1.0 + 0.1 * jax.random.uniform(next(keys), (ch,))
        params[f"conv{i + 1}_w"] = nrm(next(keys), (GROWTH, ch, KSIZE))
        params[f"conv{i + 1}_b"] = nrm(next(keys), (GROWTH,))
        ch += GROWTH

    params["bnf_gamma"] = 1.0 + nrm(next(keys), (ch,))
    params["bnf_beta"] = nrm(next(keys), (ch,))
    params["bnf_mean"] = nrm(next(keys), (ch,))
    params["bnf_var"] = 1.0 + 0.1 * jax.random.uniform(next(keys), (ch,))

    for j, d in enumerate(output_dims):
        params[f"head{j}_w"] = nrm(next(keys), (d, ch))   # torch Linear: (out, in)
        params[f"head{j}_b"] = nrm(next(keys), (d,))
    return params


def multitask_densenet_forward(params, x_ncw, output_dims):
    """x_ncw: (B, C_in, L) float32 (PyTorch NCW). Returns tuple of (B, d) arrays."""
    b, c_in, l = x_ncw.shape
    d_total = int(sum(output_dims))

    tb = _pick_batch_tile(b, l)
    assert b % tb == 0
    n_tiles = b // tb
    m = tb * l

    # channels-last rows layout: (B*L, C_in); the only XLA glue is this tiny transpose.
    x_rows = jnp.transpose(x_ncw, (0, 2, 1)).astype(jnp.float32).reshape(b * l, c_in)

    mprev, mnext = _boundary_masks(tb, l)                    # (M, 1) host constants
    packed = _pack_params(params, c_in, output_dims)

    inputs = [
        x_rows, jnp.asarray(mprev), jnp.asarray(mnext),
        packed["stem_w"], packed["stem_b"],
    ]
    for i in range(NUM_DENSE_LAYERS):
        inputs += [packed[f"bn{i}"], packed[f"w{i}"], packed[f"b{i}"]]
    inputs += [packed["bnf"], packed["head_w"], packed["head_b"]]

    in_specs = [pl.BlockSpec((m, c_in), lambda i: (i, 0))]
    in_specs += [_whole_spec(arr) for arr in inputs[1:]]

    flops = n_tiles * (2 * m * (KSIZE * c_in) * C_TOTAL
                       + NUM_DENSE_LAYERS * 2 * m * (KSIZE * C_TOTAL) * C_TOTAL
                       + 2 * tb * C_TOTAL * d_total)
    bytes_accessed = int(sum(int(np.prod(a.shape)) * a.dtype.itemsize for a in inputs)
                         + b * d_total * 4)

    out = pl.pallas_call(
        functools.partial(_fused_densenet_kernel, seq_len=l),
        out_shape=jax.ShapeDtypeStruct((b, d_total), jnp.float32),
        grid=(n_tiles,),
        in_specs=in_specs,
        out_specs=pl.BlockSpec((tb, d_total), lambda i: (i, 0)),
        compiler_params=pltpu.CompilerParams(dimension_semantics=("parallel",)),
        cost_estimate=pl.CostEstimate(flops=int(flops), transcendentals=0,
                                      bytes_accessed=bytes_accessed),
    )(*inputs)

    offsets = np.cumsum([0] + list(output_dims))
    return tuple(out[:, int(offsets[j]):int(offsets[j + 1])]
                 for j in range(len(output_dims)))


# ------------------------- pure-JAX reference (check) ------------------------

def _reference_forward(params, x_ncw, output_dims):
    hp = jax.lax.Precision.HIGHEST
    x = jnp.transpose(x_ncw, (0, 2, 1)).astype(jnp.float32)  # (B, L, Cin)

    def conv1d(z, w, bias):
        _, l, _ = z.shape
        zp = jnp.pad(z, ((0, 0), (1, 1), (0, 0)))
        cols = jnp.stack([zp[:, s:s + l, :] for s in range(KSIZE)], axis=2)  # (B,L,K,Cin)
        return jnp.einsum("blsc,ocs->blo", cols, w, precision=hp) + bias[None, None, :]

    def bn_relu(z, g, be, mu, var):
        return jnp.maximum((z - mu) / jnp.sqrt(var + BN_EPS) * g + be, 0.0)

    feats = conv1d(x, params["conv0_w"], params["conv0_b"])
    for i in range(NUM_DENSE_LAYERS):
        z = bn_relu(feats, params[f"bn{i}_gamma"], params[f"bn{i}_beta"],
                    params[f"bn{i}_mean"], params[f"bn{i}_var"])
        new = conv1d(z, params[f"conv{i + 1}_w"], params[f"conv{i + 1}_b"])
        feats = jnp.concatenate([feats, new], axis=-1)

    zf = bn_relu(feats, params["bnf_gamma"], params["bnf_beta"],
                 params["bnf_mean"], params["bnf_var"])
    pooled = jnp.mean(zf, axis=1)
    return tuple(jnp.dot(pooled, params[f"head{j}_w"].T, precision=hp)
                 + params[f"head{j}_b"] for j in range(len(output_dims)))


# ---------------------------------- main -------------------------------------

if __name__ == "__main__":
    B, C_IN, L = 2, 4, 16
    OUTPUT_DIMS = (3, 2)

    key = jax.random.PRNGKey(0)
    k_params, k_x = jax.random.split(key)

    params = init_params(k_params, input_dim=C_IN, output_dims=OUTPUT_DIMS)
    x = jax.random.normal(k_x, (B, C_IN, L), dtype=jnp.float32)

    fwd = jax.jit(functools.partial(multitask_densenet_forward, output_dims=OUTPUT_DIMS))
    outputs = jax.block_until_ready(fwd(params, x))

    refs = _reference_forward(params, x, OUTPUT_DIMS)

    assert len(outputs) == len(OUTPUT_DIMS)
    for o, r, d in zip(outputs, refs, OUTPUT_DIMS):
        assert o.shape == (B, d), o.shape
        assert jnp.all(jnp.isfinite(o))
        assert jnp.allclose(o, r, rtol=2e-2, atol=2e-2), (o, r)

    print("KERNEL_OK")
</pallas_src>

<mosaic_0001>
module attributes {stable_mosaic.version = 11 : i64} {
  func.func @_fused_densenet_kernel(%arg0: i32, %arg1: memref<32x4xf32, #tpu.memory_space<vmem>>, %arg2: memref<32x1xf32, #tpu.memory_space<vmem>>, %arg3: memref<32x1xf32, #tpu.memory_space<vmem>>, %arg4: memref<12x40xbf16, #tpu.memory_space<vmem>>, %arg5: memref<1x40xf32, #tpu.memory_space<vmem>>, %arg6: memref<2x40xf32, #tpu.memory_space<vmem>>, %arg7: memref<120x40xbf16, #tpu.memory_space<vmem>>, %arg8: memref<1x40xf32, #tpu.memory_space<vmem>>, %arg9: memref<2x40xf32, #tpu.memory_space<vmem>>, %arg10: memref<120x40xbf16, #tpu.memory_space<vmem>>, %arg11: memref<1x40xf32, #tpu.memory_space<vmem>>, %arg12: memref<2x40xf32, #tpu.memory_space<vmem>>, %arg13: memref<120x40xbf16, #tpu.memory_space<vmem>>, %arg14: memref<1x40xf32, #tpu.memory_space<vmem>>, %arg15: memref<2x40xf32, #tpu.memory_space<vmem>>, %arg16: memref<40x5xbf16, #tpu.memory_space<vmem>>, %arg17: memref<1x5xf32, #tpu.memory_space<vmem>>, %arg18: memref<2x5xf32, #tpu.memory_space<vmem>>) attributes {dimension_semantics = [#tpu.dimension_semantics<parallel>], iteration_bounds = array<i64: 1>, scalar_prefetch = 0 : i64, scratch_operands = 0 : i64, tpu.core_type = #tpu.core_type<tc>, window_params = [{transform_indices = @transform_0, window_bounds = array<i64: 32, 4>}, {pipeline_mode = #tpu.pipeline_mode<synchronous>, transform_indices = @transform_1, window_bounds = array<i64: 32, 1>}, {pipeline_mode = #tpu.pipeline_mode<synchronous>, transform_indices = @transform_2, window_bounds = array<i64: 32, 1>}, {pipeline_mode = #tpu.pipeline_mode<synchronous>, transform_indices = @transform_3, window_bounds = array<i64: 12, 40>}, {pipeline_mode = #tpu.pipeline_mode<synchronous>, transform_indices = @transform_4, window_bounds = array<i64: 1, 40>}, {pipeline_mode = #tpu.pipeline_mode<synchronous>, transform_indices = @transform_5, window_bounds = array<i64: 2, 40>}, {pipeline_mode = #tpu.pipeline_mode<synchronous>, transform_indices = @transform_6, window_bounds = array<i64: 120, 40>}, {pipeline_mode = #tpu.pipeline_mode<synchronous>, transform_indices = @transform_7, window_bounds = array<i64: 1, 40>}, {pipeline_mode = #tpu.pipeline_mode<synchronous>, transform_indices = @transform_8, window_bounds = array<i64: 2, 40>}, {pipeline_mode = #tpu.pipeline_mode<synchronous>, transform_indices = @transform_9, window_bounds = array<i64: 120, 40>}, {pipeline_mode = #tpu.pipeline_mode<synchronous>, transform_indices = @transform_10, window_bounds = array<i64: 1, 40>}, {pipeline_mode = #tpu.pipeline_mode<synchronous>, transform_indices = @transform_11, window_bounds = array<i64: 2, 40>}, {pipeline_mode = #tpu.pipeline_mode<synchronous>, transform_indices = @transform_12, window_bounds = array<i64: 120, 40>}, {pipeline_mode = #tpu.pipeline_mode<synchronous>, transform_indices = @transform_13, window_bounds = array<i64: 1, 40>}, {pipeline_mode = #tpu.pipeline_mode<synchronous>, transform_indices = @transform_14, window_bounds = array<i64: 2, 40>}, {pipeline_mode = #tpu.pipeline_mode<synchronous>, transform_indices = @transform_15, window_bounds = array<i64: 40, 5>}, {pipeline_mode = #tpu.pipeline_mode<synchronous>, transform_indices = @transform_16, window_bounds = array<i64: 1, 5>}, {transform_indices = @transform_17, window_bounds = array<i64: 2, 5>}]} {
    %c0 = arith.constant 0 : index
    %c0_0 = arith.constant 0 : index
    %0 = vector.load %arg2[%c0, %c0_0] : memref<32x1xf32, #tpu.memory_space<vmem>>, vector<32x1xf32>
    %c0_1 = arith.constant 0 : index
    %c0_2 = arith.constant 0 : index
    %1 = vector.load %arg3[%c0_1, %c0_2] : memref<32x1xf32, #tpu.memory_space<vmem>>, vector<32x1xf32>
    %c0_3 = arith.constant 0 : index
    %c0_4 = arith.constant 0 : index
    %2 = vector.load %arg1[%c0_3, %c0_4] : memref<32x4xf32, #tpu.memory_space<vmem>>, vector<32x4xf32>
    %c1_i32 = arith.constant 1 : i32
    %3 = tpu.dynamic_rotate %2 by %c1_i32 dim 0 : vector<32x4xf32>, i32 -> vector<32x4xf32>
    %4 = vector.broadcast %0 : vector<32x1xf32> to vector<32x4xf32>
    %5 = arith.mulf %3, %4 : vector<32x4xf32>
    %c31_i32 = arith.constant 31 : i32
    %6 = tpu.dynamic_rotate %2 by %c31_i32 dim 0 : vector<32x4xf32>, i32 -> vector<32x4xf32>
    %7 = vector.broadcast %1 : vector<32x1xf32> to vector<32x4xf32>
    %8 = arith.mulf %6, %7 : vector<32x4xf32>
    %9 = tpu.concatenate %5, %2, %8 in 1 : vector<32x4xf32>, vector<32x4xf32>, vector<32x4xf32> -> vector<32x12xf32>
    %10 = arith.truncf %9 : vector<32x12xf32> to vector<32x12xbf16>
    %c0_5 = arith.constant 0 : index
    %c0_6 = arith.constant 0 : index
    %11 = vector.load %arg4[%c0_5, %c0_6] : memref<12x40xbf16, #tpu.memory_space<vmem>>, vector<12x40xbf16>
    %cst = arith.constant dense<0.000000e+00> : vector<32x40xf32>
    %12 = tpu.matmul %10, %11, %cst {dimension_numbers = #tpu.dot_dimension_numbers<[1], [0], [0], [1], [0, 0, 1, 1], [], []>} : vector<32x12xbf16>, vector<12x40xbf16>, vector<32x40xf32> -> vector<32x40xf32>
    %c0_7 = arith.constant 0 : index
    %c0_8 = arith.constant 0 : index
    %13 = vector.load %arg5[%c0_7, %c0_8] : memref<1x40xf32, #tpu.memory_space<vmem>>, vector<1x40xf32>
    %14 = vector.broadcast %13 : vector<1x40xf32> to vector<32x40xf32>
    %15 = arith.addf %12, %14 : vector<32x40xf32>
    %c0_9 = arith.constant 0 : index
    %c0_10 = arith.constant 0 : index
    %16 = vector.load %arg6[%c0_9, %c0_10] : memref<2x40xf32, #tpu.memory_space<vmem>>, vector<2x40xf32>
    %17 = vector.extract_strided_slice %16 {offsets = [0, 0], sizes = [1, 40], strides = [1, 1]} : vector<2x40xf32> to vector<1x40xf32>
    %18 = vector.broadcast %17 : vector<1x40xf32> to vector<32x40xf32>
    %19 = arith.mulf %15, %18 : vector<32x40xf32>
    %20 = vector.extract_strided_slice %16 {offsets = [1, 0], sizes = [1, 40], strides = [1, 1]} : vector<2x40xf32> to vector<1x40xf32>
    %21 = vector.broadcast %20 : vector<1x40xf32> to vector<32x40xf32>
    %22 = arith.addf %19, %21 : vector<32x40xf32>
    %cst_11 = arith.constant 0.000000e+00 : f32
    %23 = vector.broadcast %cst_11 : f32 to vector<32x40xf32>
    %24 = arith.maximumf %22, %23 : vector<32x40xf32>
    %c1_i32_12 = arith.constant 1 : i32
    %25 = tpu.dynamic_rotate %24 by %c1_i32_12 dim 0 : vector<32x40xf32>, i32 -> vector<32x40xf32>
    %26 = vector.broadcast %0 : vector<32x1xf32> to vector<32x40xf32>
    %27 = arith.mulf %25, %26 : vector<32x40xf32>
    %c31_i32_13 = arith.constant 31 : i32
    %28 = tpu.dynamic_rotate %24 by %c31_i32_13 dim 0 : vector<32x40xf32>, i32 -> vector<32x40xf32>
    %29 = vector.broadcast %1 : vector<32x1xf32> to vector<32x40xf32>
    %30 = arith.mulf %28, %29 : vector<32x40xf32>
    %31 = tpu.concatenate %27, %24, %30 in 1 : vector<32x40xf32>, vector<32x40xf32>, vector<32x40xf32> -> vector<32x120xf32>
    %32 = arith.truncf %31 : vector<32x120xf32> to vector<32x120xbf16>
    %c0_14 = arith.constant 0 : index
    %c0_15 = arith.constant 0 : index
    %33 = vector.load %arg7[%c0_14, %c0_15] : memref<120x40xbf16, #tpu.memory_space<vmem>>, vector<120x40xbf16>
    %cst_16 = arith.constant dense<0.000000e+00> : vector<32x40xf32>
    %34 = tpu.matmul %32, %33, %cst_16 {dimension_numbers = #tpu.dot_dimension_numbers<[1], [0], [0], [1], [0, 0, 1, 1], [], []>} : vector<32x120xbf16>, vector<120x40xbf16>, vector<32x40xf32> -> vector<32x40xf32>
    %c0_17 = arith.constant 0 : index
    %c0_18 = arith.constant 0 : index
    %35 = vector.load %arg8[%c0_17, %c0_18] : memref<1x40xf32, #tpu.memory_space<vmem>>, vector<1x40xf32>
    %36 = vector.broadcast %35 : vector<1x40xf32> to vector<32x40xf32>
    %37 = arith.addf %34, %36 : vector<32x40xf32>
    %38 = arith.addf %15, %37 : vector<32x40xf32>
    %c0_19 = arith.constant 0 : index
    %c0_20 = arith.constant 0 : index
    %39 = vector.load %arg9[%c0_19, %c0_20] : memref<2x40xf32, #tpu.memory_space<vmem>>, vector<2x40xf32>
    %40 = vector.extract_strided_slice %39 {offsets = [0, 0], sizes = [1, 40], strides = [1, 1]} : vector<2x40xf32> to vector<1x40xf32>
    %41 = vector.broadcast %40 : vector<1x40xf32> to vector<32x40xf32>
    %42 = arith.mulf %38, %41 : vector<32x40xf32>
    %43 = vector.extract_strided_slice %39 {offsets = [1, 0], sizes = [1, 40], strides = [1, 1]} : vector<2x40xf32> to vector<1x40xf32>
    %44 = vector.broadcast %43 : vector<1x40xf32> to vector<32x40xf32>
    %45 = arith.addf %42, %44 : vector<32x40xf32>
    %cst_21 = arith.constant 0.000000e+00 : f32
    %46 = vector.broadcast %cst_21 : f32 to vector<32x40xf32>
    %47 = arith.maximumf %45, %46 : vector<32x40xf32>
    %c1_i32_22 = arith.constant 1 : i32
    %48 = tpu.dynamic_rotate %47 by %c1_i32_22 dim 0 : vector<32x40xf32>, i32 -> vector<32x40xf32>
    %49 = vector.broadcast %0 : vector<32x1xf32> to vector<32x40xf32>
    %50 = arith.mulf %48, %49 : vector<32x40xf32>
    %c31_i32_23 = arith.constant 31 : i32
    %51 = tpu.dynamic_rotate %47 by %c31_i32_23 dim 0 : vector<32x40xf32>, i32 -> vector<32x40xf32>
    %52 = vector.broadcast %1 : vector<32x1xf32> to vector<32x40xf32>
    %53 = arith.mulf %51, %52 : vector<32x40xf32>
    %54 = tpu.concatenate %50, %47, %53 in 1 : vector<32x40xf32>, vector<32x40xf32>, vector<32x40xf32> -> vector<32x120xf32>
    %55 = arith.truncf %54 : vector<32x120xf32> to vector<32x120xbf16>
    %c0_24 = arith.constant 0 : index
    %c0_25 = arith.constant 0 : index
    %56 = vector.load %arg10[%c0_24, %c0_25] : memref<120x40xbf16, #tpu.memory_space<vmem>>, vector<120x40xbf16>
    %cst_26 = arith.constant dense<0.000000e+00> : vector<32x40xf32>
    %57 = tpu.matmul %55, %56, %cst_26 {dimension_numbers = #tpu.dot_dimension_numbers<[1], [0], [0], [1], [0, 0, 1, 1], [], []>} : vector<32x120xbf16>, vector<120x40xbf16>, vector<32x40xf32> -> vector<32x40xf32>
    %c0_27 = arith.constant 0 : index
    %c0_28 = arith.constant 0 : index
    %58 = vector.load %arg11[%c0_27, %c0_28] : memref<1x40xf32, #tpu.memory_space<vmem>>, vector<1x40xf32>
    %59 = vector.broadcast %58 : vector<1x40xf32> to vector<32x40xf32>
    %60 = arith.addf %57, %59 : vector<32x40xf32>
    %61 = arith.addf %38, %60 : vector<32x40xf32>
    %c0_29 = arith.constant 0 : index
    %c0_30 = arith.constant 0 : index
    %62 = vector.load %arg12[%c0_29, %c0_30] : memref<2x40xf32, #tpu.memory_space<vmem>>, vector<2x40xf32>
    %63 = vector.extract_strided_slice %62 {offsets = [0, 0], sizes = [1, 40], strides = [1, 1]} : vector<2x40xf32> to vector<1x40xf32>
    %64 = vector.broadcast %63 : vector<1x40xf32> to vector<32x40xf32>
    %65 = arith.mulf %61, %64 : vector<32x40xf32>
    %66 = vector.extract_strided_slice %62 {offsets = [1, 0], sizes = [1, 40], strides = [1, 1]} : vector<2x40xf32> to vector<1x40xf32>
    %67 = vector.broadcast %66 : vector<1x40xf32> to vector<32x40xf32>
    %68 = arith.addf %65, %67 : vector<32x40xf32>
    %cst_31 = arith.constant 0.000000e+00 : f32
    %69 = vector.broadcast %cst_31 : f32 to vector<32x40xf32>
    %70 = arith.maximumf %68, %69 : vector<32x40xf32>
    %c1_i32_32 = arith.constant 1 : i32
    %71 = tpu.dynamic_rotate %70 by %c1_i32_32 dim 0 : vector<32x40xf32>, i32 -> vector<32x40xf32>
    %72 = vector.broadcast %0 : vector<32x1xf32> to vector<32x40xf32>
    %73 = arith.mulf %71, %72 : vector<32x40xf32>
    %c31_i32_33 = arith.constant 31 : i32
    %74 = tpu.dynamic_rotate %70 by %c31_i32_33 dim 0 : vector<32x40xf32>, i32 -> vector<32x40xf32>
    %75 = vector.broadcast %1 : vector<32x1xf32> to vector<32x40xf32>
    %76 = arith.mulf %74, %75 : vector<32x40xf32>
    %77 = tpu.concatenate %73, %70, %76 in 1 : vector<32x40xf32>, vector<32x40xf32>, vector<32x40xf32> -> vector<32x120xf32>
    %78 = arith.truncf %77 : vector<32x120xf32> to vector<32x120xbf16>
    %c0_34 = arith.constant 0 : index
    %c0_35 = arith.constant 0 : index
    %79 = vector.load %arg13[%c0_34, %c0_35] : memref<120x40xbf16, #tpu.memory_space<vmem>>, vector<120x40xbf16>
    %cst_36 = arith.constant dense<0.000000e+00> : vector<32x40xf32>
    %80 = tpu.matmul %78, %79, %cst_36 {dimension_numbers = #tpu.dot_dimension_numbers<[1], [0], [0], [1], [0, 0, 1, 1], [], []>} : vector<32x120xbf16>, vector<120x40xbf16>, vector<32x40xf32> -> vector<32x40xf32>
    %c0_37 = arith.constant 0 : index
    %c0_38 = arith.constant 0 : index
    %81 = vector.load %arg14[%c0_37, %c0_38] : memref<1x40xf32, #tpu.memory_space<vmem>>, vector<1x40xf32>
    %82 = vector.broadcast %81 : vector<1x40xf32> to vector<32x40xf32>
    %83 = arith.addf %80, %82 : vector<32x40xf32>
    %84 = arith.addf %61, %83 : vector<32x40xf32>
    %c0_39 = arith.constant 0 : index
    %c0_40 = arith.constant 0 : index
    %85 = vector.load %arg15[%c0_39, %c0_40] : memref<2x40xf32, #tpu.memory_space<vmem>>, vector<2x40xf32>
    %86 = vector.extract_strided_slice %85 {offsets = [0, 0], sizes = [1, 40], strides = [1, 1]} : vector<2x40xf32> to vector<1x40xf32>
    %87 = vector.broadcast %86 : vector<1x40xf32> to vector<32x40xf32>
    %88 = arith.mulf %84, %87 : vector<32x40xf32>
    %89 = vector.extract_strided_slice %85 {offsets = [1, 0], sizes = [1, 40], strides = [1, 1]} : vector<2x40xf32> to vector<1x40xf32>
    %90 = vector.broadcast %89 : vector<1x40xf32> to vector<32x40xf32>
    %91 = arith.addf %88, %90 : vector<32x40xf32>
    %cst_41 = arith.constant 0.000000e+00 : f32
    %92 = vector.broadcast %cst_41 : f32 to vector<32x40xf32>
    %93 = arith.maximumf %91, %92 : vector<32x40xf32>
    %94 = vector.shape_cast %93 : vector<32x40xf32> to vector<2x16x40xf32>
    %cst_42 = arith.constant dense<0.000000e+00> : vector<2x40xf32>
    %95 = vector.multi_reduction <add>, %94, %cst_42 [1] : vector<2x16x40xf32> to vector<2x40xf32>
    %cst_43 = arith.constant 6.250000e-02 : f32
    %96 = vector.broadcast %cst_43 : f32 to vector<2x40xf32>
    %97 = arith.mulf %95, %96 : vector<2x40xf32>
    %98 = arith.truncf %97 : vector<2x40xf32> to vector<2x40xbf16>
    %c0_44 = arith.constant 0 : index
    %c0_45 = arith.constant 0 : index
    %99 = vector.load %arg16[%c0_44, %c0_45] : memref<40x5xbf16, #tpu.memory_space<vmem>>, vector<40x5xbf16>
    %cst_46 = arith.constant dense<0.000000e+00> : vector<2x5xf32>
    %100 = tpu.matmul %98, %99, %cst_46 {dimension_numbers = #tpu.dot_dimension_numbers<[1], [0], [0], [1], [0, 0, 1, 1], [], []>} : vector<2x40xbf16>, vector<40x5xbf16>, vector<2x5xf32> -> vector<2x5xf32>
    %c0_47 = arith.constant 0 : index
    %c0_48 = arith.constant 0 : index
    %101 = vector.load %arg17[%c0_47, %c0_48] : memref<1x5xf32, #tpu.memory_space<vmem>>, vector<1x5xf32>
    %102 = vector.broadcast %101 : vector<1x5xf32> to vector<2x5xf32>
    %103 = arith.addf %100, %102 : vector<2x5xf32>
    %c0_49 = arith.constant 0 : index
    %c0_50 = arith.constant 0 : index
    %104 = vector.load %arg18[%c0_49, %c0_50] : memref<2x5xf32, #tpu.memory_space<vmem>>, vector<2x5xf32>
    tpu.vector_store %arg18[%c0_49, %c0_50], %103 {strides = array<i32>} : memref<2x5xf32, #tpu.memory_space<vmem>>, vector<2x5xf32>,
    return
  }
  func.func @transform_0(%arg0: i32) -> (i32, i32) {
    %c0_i32 = arith.constant 0 : i32
    %c0_i32_0 = arith.constant 0 : i32
    return %arg0, %c0_i32 : i32, i32
  }
  func.func @transform_1(%arg0: i32) -> (i32, i32) {
    %c0_i32 = arith.constant 0 : i32
    %c0_i32_0 = arith.constant 0 : i32
    %c0_i32_1 = arith.constant 0 : i32
    return %c0_i32, %c0_i32_0 : i32, i32
  }
  func.func @transform_2(%arg0: i32) -> (i32, i32) {
    %c0_i32 = arith.constant 0 : i32
    %c0_i32_0 = arith.constant 0 : i32
    %c0_i32_1 = arith.constant 0 : i32
    return %c0_i32, %c0_i32_0 : i32, i32
  }
  func.func @transform_3(%arg0: i32) -> (i32, i32) {
    %c0_i32 = arith.constant 0 : i32
    %c0_i32_0 = arith.constant 0 : i32
    %c0_i32_1 = arith.constant 0 : i32
    return %c0_i32, %c0_i32_0 : i32, i32
  }
  func.func @transform_4(%arg0: i32) -> (i32, i32) {
    %c0_i32 = arith.constant 0 : i32
    %c0_i32_0 = arith.constant 0 : i32
    %c0_i32_1 = arith.constant 0 : i32
    return %c0_i32, %c0_i32_0 : i32, i32
  }
  func.func @transform_5(%arg0: i32) -> (i32, i32) {
    %c0_i32 = arith.constant 0 : i32
    %c0_i32_0 = arith.constant 0 : i32
    %c0_i32_1 = arith.constant 0 : i32
    return %c0_i32, %c0_i32_0 : i32, i32
  }
  func.func @transform_6(%arg0: i32) -> (i32, i32) {
    %c0_i32 = arith.constant 0 : i32
    %c0_i32_0 = arith.constant 0 : i32
    %c0_i32_1 = arith.constant 0 : i32
    return %c0_i32, %c0_i32_0 : i32, i32
  }
  func.func @transform_7(%arg0: i32) -> (i32, i32) {
    %c0_i32 = arith.constant 0 : i32
    %c0_i32_0 = arith.constant 0 : i32
    %c0_i32_1 = arith.constant 0 : i32
    return %c0_i32, %c0_i32_0 : i32, i32
  }
  func.func @transform_8(%arg0: i32) -> (i32, i32) {
    %c0_i32 = arith.constant 0 : i32
    %c0_i32_0 = arith.constant 0 : i32
    %c0_i32_1 = arith.constant 0 : i32
    return %c0_i32, %c0_i32_0 : i32, i32
  }
  func.func @transform_9(%arg0: i32) -> (i32, i32) {
    %c0_i32 = arith.constant 0 : i32
    %c0_i32_0 = arith.constant 0 : i32
    %c0_i32_1 = arith.constant 0 : i32
    return %c0_i32, %c0_i32_0 : i32, i32
  }
  func.func @transform_10(%arg0: i32) -> (i32, i32) {
    %c0_i32 = arith.constant 0 : i32
    %c0_i32_0 = arith.constant 0 : i32
    %c0_i32_1 = arith.constant 0 : i32
    return %c0_i32, %c0_i32_0 : i32, i32
  }
  func.func @transform_11(%arg0: i32) -> (i32, i32) {
    %c0_i32 = arith.constant 0 : i32
    %c0_i32_0 = arith.constant 0 : i32
    %c0_i32_1 = arith.constant 0 : i32
    return %c0_i32, %c0_i32_0 : i32, i32
  }
  func.func @transform_12(%arg0: i32) -> (i32, i32) {
    %c0_i32 = arith.constant 0 : i32
    %c0_i32_0 = arith.constant 0 : i32
    %c0_i32_1 = arith.constant 0 : i32
    return %c0_i32, %c0_i32_0 : i32, i32
  }
  func.func @transform_13(%arg0: i32) -> (i32, i32) {
    %c0_i32 = arith.constant 0 : i32
    %c0_i32_0 = arith.constant 0 : i32
    %c0_i32_1 = arith.constant 0 : i32
    return %c0_i32, %c0_i32_0 : i32, i32
  }
  func.func @transform_14(%arg0: i32) -> (i32, i32) {
    %c0_i32 = arith.constant 0 : i32
    %c0_i32_0 = arith.constant 0 : i32
    %c0_i32_1 = arith.constant 0 : i32
    return %c0_i32, %c0_i32_0 : i32, i32
  }
  func.func @transform_15(%arg0: i32) -> (i32, i32) {
    %c0_i32 = arith.constant 0 : i32
    %c0_i32_0 = arith.constant 0 : i32
    %c0_i32_1 = arith.constant 0 : i32
    return %c0_i32, %c0_i32_0 : i32, i32
  }
  func.func @transform_16(%arg0: i32) -> (i32, i32) {
    %c0_i32 = arith.constant 0 : i32
    %c0_i32_0 = arith.constant 0 : i32
    %c0_i32_1 = arith.constant 0 : i32
    return %c0_i32, %c0_i32_0 : i32, i32
  }
  func.func @transform_17(%arg0: i32) -> (i32, i32) {
    %c0_i32 = arith.constant 0 : i32
    %c0_i32_0 = arith.constant 0 : i32
    return %arg0, %c0_i32 : i32, i32
  }
}

</mosaic_0001>

<llo_original>
// kernel: multitask_densenet_forward.1
$region0: #{multitask_densenet_forward.1}
  #allocation0 [shape = 'u32[]', space=smem, size = 0x4, offset = 0x4, fixed_abs, tag = 'smem constant byte address 0x4 - core index']
  #allocation1 [shape = 'u32[144,128]{1,0:T(1,128)}', space=vmem, size = 0x12000, scoped, tag = 'internal scratch']
  %s0 = inlined_call_operand.vmem [shape: f32[32,4], index: 0, kind: input, shape index: {}]
  %s1 = inlined_call_operand.vmem [shape: f32[32,1], index: 1, kind: input, shape index: {}]
  %s2 = inlined_call_operand.vmem [shape: f32[32,1], index: 2, kind: input, shape index: {}]
  %s3 = inlined_call_operand.vmem [shape: bf16[12,40], index: 3, kind: input, shape index: {}]
  %s4 = inlined_call_operand.vmem [shape: f32[1,40], index: 4, kind: input, shape index: {}]
  %s5 = inlined_call_operand.vmem [shape: f32[2,40], index: 5, kind: input, shape index: {}]
  %s6 = inlined_call_operand.vmem [shape: bf16[120,40], index: 6, kind: input, shape index: {}]
  %s7 = inlined_call_operand.vmem [shape: f32[1,40], index: 7, kind: input, shape index: {}]
  %s8 = inlined_call_operand.vmem [shape: f32[2,40], index: 8, kind: input, shape index: {}]
  %s9 = inlined_call_operand.vmem [shape: bf16[120,40], index: 9, kind: input, shape index: {}]
  %s10 = inlined_call_operand.vmem [shape: f32[1,40], index: 10, kind: input, shape index: {}]
  %s11 = inlined_call_operand.vmem [shape: f32[2,40], index: 11, kind: input, shape index: {}]
  %s12 = inlined_call_operand.vmem [shape: bf16[120,40], index: 12, kind: input, shape index: {}]
  %s13 = inlined_call_operand.vmem [shape: f32[1,40], index: 13, kind: input, shape index: {}]
  %s14 = inlined_call_operand.vmem [shape: f32[2,40], index: 14, kind: input, shape index: {}]
  %s15 = inlined_call_operand.vmem [shape: bf16[40,5], index: 15, kind: input, shape index: {}]
  %s16 = inlined_call_operand.vmem [shape: f32[1,5], index: 16, kind: input, shape index: {}]
  %s17 = inlined_call_operand.vmem [shape: f32[2,5], index: 17, kind: output, shape index: {}]
  %s18 = sld [smem:[#allocation0]]
  $region78: #{multitask_densenet_forward.1} parent=0
    _
  %s20 = ssub.s32 1, %s18
  %s21 = scalar_select 0, %s20, %s18
  // Predicated region
  $region2: #{multitask_densenet_forward.1} parent=0 // pred_check
    _
  $region3: #{multitask_densenet_forward.1} parent=0 // pred_check_branch
    %23 = sbr.rel (0) target = $region5
  $region4: #{multitask_densenet_forward.1} parent=0 // pred_region
    _
  $region5: #{multitask_densenet_forward.1} parent=0 // pred_fallthru
    _
  // Predicated region
  $region6: #{multitask_densenet_forward.1} parent=0 // pred_check
    _
  $region7: #{multitask_densenet_forward.1} parent=0 // pred_check_branch
    %25 = sbr.rel (0) target = $region9
  $region8: #{multitask_densenet_forward.1} parent=0 // pred_region
    _
  $region9: #{multitask_densenet_forward.1} parent=0 // pred_fallthru
    _
  // Predicated region
  $region10: #{multitask_densenet_forward.1} parent=0 // pred_check
    _
  $region11: #{multitask_densenet_forward.1} parent=0 // pred_check_branch
    %27 = sbr.rel (0) target = $region13
  $region12: #{multitask_densenet_forward.1} parent=0 // pred_region
    _
  $region13: #{multitask_densenet_forward.1} parent=0 // pred_fallthru
    _
  // Predicated region
  $region14: #{multitask_densenet_forward.1} parent=0 // pred_check
    _
  $region15: #{multitask_densenet_forward.1} parent=0 // pred_check_branch
    %29 = sbr.rel (0) target = $region17
  $region16: #{multitask_densenet_forward.1} parent=0 // pred_region
    _
  $region17: #{multitask_densenet_forward.1} parent=0 // pred_fallthru
    _
  // Predicated region
  $region18: #{multitask_densenet_forward.1} parent=0 // pred_check
    _
  $region19: #{multitask_densenet_forward.1} parent=0 // pred_check_branch
    %31 = sbr.rel (0) target = $region21
  $region20: #{multitask_densenet_forward.1} parent=0 // pred_region
    _
  $region21: #{multitask_densenet_forward.1} parent=0 // pred_fallthru
    _
  // Predicated region
  $region22: #{multitask_densenet_forward.1} parent=0 // pred_check
    _
  $region23: #{multitask_densenet_forward.1} parent=0 // pred_check_branch
    %33 = sbr.rel (0) target = $region25
  $region24: #{multitask_densenet_forward.1} parent=0 // pred_region
    _
  $region25: #{multitask_densenet_forward.1} parent=0 // pred_fallthru
    _
  // Predicated region
  $region26: #{multitask_densenet_forward.1} parent=0 // pred_check
    _
  $region27: #{multitask_densenet_forward.1} parent=0 // pred_check_branch
    %35 = sbr.rel (0) target = $region29
  $region28: #{multitask_densenet_forward.1} parent=0 // pred_region
    _
  $region29: #{multitask_densenet_forward.1} parent=0 // pred_fallthru
    _
  // Predicated region
  $region30: #{multitask_densenet_forward.1} parent=0 // pred_check
    _
  $region31: #{multitask_densenet_forward.1} parent=0 // pred_check_branch
    %37 = sbr.rel (0) target = $region33
  $region32: #{multitask_densenet_forward.1} parent=0 // pred_region
    _
  $region33: #{multitask_densenet_forward.1} parent=0 // pred_fallthru
    _
  // Predicated region
  $region34: #{multitask_densenet_forward.1} parent=0 // pred_check
    _
  $region35: #{multitask_densenet_forward.1} parent=0 // pred_check_branch
    %39 = sbr.rel (0) target = $region37
  $region36: #{multitask_densenet_forward.1} parent=0 // pred_region
    _
  $region37: #{multitask_densenet_forward.1} parent=0 // pred_fallthru
    _
  // Predicated region
  $region38: #{multitask_densenet_forward.1} parent=0 // pred_check
    _
  $region39: #{multitask_densenet_forward.1} parent=0 // pred_check_branch
    %41 = sbr.rel (0) target = $region41
  $region40: #{multitask_densenet_forward.1} parent=0 // pred_region
    _
  $region41: #{multitask_densenet_forward.1} parent=0 // pred_fallthru
    _
  // Predicated region
  $region42: #{multitask_densenet_forward.1} parent=0 // pred_check
    _
  $region43: #{multitask_densenet_forward.1} parent=0 // pred_check_branch
    %43 = sbr.rel (0) target = $region45
  $region44: #{multitask_densenet_forward.1} parent=0 // pred_region
    _
  $region45: #{multitask_densenet_forward.1} parent=0 // pred_fallthru
    _
  // Predicated region
  $region46: #{multitask_densenet_forward.1} parent=0 // pred_check
    _
  $region47: #{multitask_densenet_forward.1} parent=0 // pred_check_branch
    %45 = sbr.rel (0) target = $region49
  $region48: #{multitask_densenet_forward.1} parent=0 // pred_region
    _
  $region49: #{multitask_densenet_forward.1} parent=0 // pred_fallthru
    _
  // Predicated region
  $region50: #{multitask_densenet_forward.1} parent=0 // pred_check
    _
  $region51: #{multitask_densenet_forward.1} parent=0 // pred_check_branch
    %47 = sbr.rel (0) target = $region53
  $region52: #{multitask_densenet_forward.1} parent=0 // pred_region
    _
  $region53: #{multitask_densenet_forward.1} parent=0 // pred_fallthru
    _
  // Predicated region
  $region54: #{multitask_densenet_forward.1} parent=0 // pred_check
    _
  $region55: #{multitask_densenet_forward.1} parent=0 // pred_check_branch
    %49 = sbr.rel (0) target = $region57
  $region56: #{multitask_densenet_forward.1} parent=0 // pred_region
    _
  $region57: #{multitask_densenet_forward.1} parent=0 // pred_fallthru
    _
  // Predicated region
  $region58: #{multitask_densenet_forward.1} parent=0 // pred_check
    _
  $region59: #{multitask_densenet_forward.1} parent=0 // pred_check_branch
    %51 = sbr.rel (0) target = $region61
  $region60: #{multitask_densenet_forward.1} parent=0 // pred_region
    _
  $region61: #{multitask_densenet_forward.1} parent=0 // pred_fallthru
    _
  // Predicated region
  $region62: #{multitask_densenet_forward.1} parent=0 // pred_check
    _
  $region63: #{multitask_densenet_forward.1} parent=0 // pred_check_branch
    %53 = sbr.rel (0) target = $region65
  $region64: #{multitask_densenet_forward.1} parent=0 // pred_region
    _
  $region65: #{multitask_densenet_forward.1} parent=0 // pred_fallthru
    _
  // Predicated region
  $region66: #{multitask_densenet_forward.1} parent=0 // pred_check
    _
  $region67: #{multitask_densenet_forward.1} parent=0 // pred_check_branch
    %55 = sbr.rel (0) target = $region69
  $region68: #{multitask_densenet_forward.1} parent=0 // pred_region
    _
  $region69: #{multitask_densenet_forward.1} parent=0 // pred_fallthru
    _
  %v57 = vld [vmem:[%s1] sm:$0xff]
  %v58 = vld [vmem:[%s1 + $0x8] sm:$0xff]
  %v59 = vld [vmem:[%s1 + $0x10] sm:$0xff]
  %v60 = vld [vmem:[%s1 + $0x18] sm:$0xff]
  %v61 = vld [vmem:[%s2] sm:$0xff]
  %v62 = vld [vmem:[%s2 + $0x8] sm:$0xff]
  %v63 = vld [vmem:[%s2 + $0x10] sm:$0xff]
  %v64 = vld [vmem:[%s2 + $0x18] sm:$0xff]
  %v65 = vld [vmem:[%s0] sm:$0xff]
  %v66 = vld [vmem:[%s0 + $0x8] sm:$0xff]
  %v67 = vld [vmem:[%s0 + $0x10] sm:$0xff]
  %v68 = vld [vmem:[%s0 + $0x18] sm:$0xff]
  %v69 = vrot.slane %v65, 7
  %v70 = vrot.slane %v66, 7
  %v71 = vrot.slane %v67, 7
  %v72 = vrot.slane %v68, 7
  %v73 = vlaneseq
  %v74 = vshrl.u32 %v73, 7
  %vm75 = vcmp.lt.s32.totalorder %v74, 1
  %v76 = vsel %vm75, %v71, %v72
  %v77 = vsel %vm75, %v70, %v71
  %v78 = vsel %vm75, %v69, %v70
  %v79 = vsel %vm75, %v72, %v69
  %81 = vset.pattern.permute.xlu0 0
  %82 = vperm.xlu0 %81, %v57
  %v83 = vpop.permute.xlu0 %82
  %86 = vset.pattern.permute.xlu0 0
  %87 = vperm.xlu0 %86, %v58
  %v88 = vpop.permute.xlu0 %87
  %91 = vset.pattern.permute.xlu0 0
  %92 = vperm.xlu0 %91, %v59
  %v93 = vpop.permute.xlu0 %92
  %96 = vset.pattern.permute.xlu0 0
  %97 = vperm.xlu0 %96, %v60
  %v98 = vpop.permute.xlu0 %97
  %v100 = vmul.f32 %v79, %v83
  %v101 = vmul.f32 %v78, %v88
  %v102 = vmul.f32 %v77, %v93
  %v103 = vmul.f32 %v76, %v98
  %v104 = vrot.slane %v65, 1
  %v105 = vrot.slane %v66, 1
  %v106 = vrot.slane %v67, 1
  %v107 = vrot.slane %v68, 1
  %vm108 = vcmp.lt.s32.totalorder %v74, 7
  %v109 = vsel %vm108, %v106, %v107
  %v110 = vsel %vm108, %v105, %v106
  %v111 = vsel %vm108, %v104, %v105
  %v112 = vsel %vm108, %v107, %v104
  %114 = vset.pattern.permute.xlu0 0
  %115 = vperm.xlu0 %114, %v61
  %v116 = vpop.permute.xlu0 %115
  %119 = vset.pattern.permute.xlu0 0
  %120 = vperm.xlu0 %119, %v62
  %v121 = vpop.permute.xlu0 %120
  %124 = vset.pattern.permute.xlu0 0
  %125 = vperm.xlu0 %124, %v63
  %v126 = vpop.permute.xlu0 %125
  %129 = vset.pattern.permute.xlu0 0
  %130 = vperm.xlu0 %129, %v64
  %v131 = vpop.permute.xlu0 %130
  %v133 = vmul.f32 %v111, %v116
  %v134 = vmul.f32 %v110, %v121
  %v135 = vmul.f32 %v109, %v126
  %v136 = vmul.f32 %v112, %v131
  %141 = vrot.lane.b32.xlu0 %v65, 4
  %v142 = vpop.permute.xlu0 %141
  %143 = vrot.lane.b32.xlu0 %v66, 4
  %v144 = vpop.permute.xlu0 %143
  %145 = vrot.lane.b32.xlu0 %v67, 4
  %v146 = vpop.permute.xlu0 %145
  %147 = vrot.lane.b32.xlu0 %v68, 4
  %v148 = vpop.permute.xlu0 %147
  %157 = vrot.lane.b32.xlu0 %v133, 8
  %v158 = vpop.permute.xlu0 %157
  %159 = vrot.lane.b32.xlu0 %v134, 8
  %v160 = vpop.permute.xlu0 %159
  %161 = vrot.lane.b32.xlu0 %v135, 8
  %v162 = vpop.permute.xlu0 %161
  %163 = vrot.lane.b32.xlu0 %v136, 8
  %v164 = vpop.permute.xlu0 %163
  %vm169 = vcmask 31744
  %v170 = vsel %vm169, %v100, %v142
  %v171 = vsel %vm169, %v101, %v144
  %v172 = vsel %vm169, %v102, %v146
  %v173 = vsel %vm169, %v103, %v148
  %vm174 = vcmask 64512
  %v175 = vsel %vm174, %v170, %v158
  %v176 = vsel %vm174, %v171, %v160
  %v177 = vsel %vm174, %v172, %v162
  %v178 = vsel %vm174, %v173, %v164
  %v179 = vpack.c.bf16 %v176, %v175
  %v180 = vpack.c.bf16 %v178, %v177
  %v181 = vld [vmem:[%s3] sm:$0xf]
  %v182 = vld [vmem:[%s3 + $0x4] sm:$0x3]
  %v183 = vld [vmem:[%s4] sm:$0x1]
  %v185 = vlaneseq
  %v186 = vshrl.u32 %v185, 7
  %v187 = vsub.s32 0, %v186
  %v188 = vrot.slane %v183, %v187
  %v192 = vunpack.c.l.b16 %v181
  %v193 = vunpack.c.l.b16 %v182
  %v194 = vpack.c.b16 %v193, %v192
  %vm195 = vcmask 97280
  %v197 = vsel %vm195, %v179, 0
  %v200 = vsel %vm195, %v180, 0
  %vm202 = vcmask 1045504
  %v204 = vsel %vm202, %v194, 0
  %206 = vmatprep.subr.bf16.mxu0 0
  %207 = vmatpush1.bf16.msra.mxu0 %v204
  %208 = vmatprep.subr.bf16.mxu0 0
  %209 = vmatpush1.bf16.msra.mxu0 0
  %210 = vmatprep.subr.bf16.mxu0 0
  %211 = vmatpush1.bf16.msra.mxu0 0
  %212 = vmatprep.subr.bf16.mxu0 0
  %213 = vmatpush1.bf16.msra.mxu0 0
  %214 = vmatprep.subr.bf16.mxu0 0
  %215 = vmatpush1.bf16.msra.mxu0 0
  %216 = vmatprep.subr.bf16.mxu0 0
  %217 = vmatpush1.bf16.msra.mxu0 0
  %218 = vmatprep.subr.bf16.mxu0 0
  %219 = vmatpush1.bf16.msra.mxu0 0
  %220 = vmatprep.subr.bf16.mxu0 0
  %221 = vmatpush1.bf16.msra.mxu0 0
  %222 = vmatprep.subr.bf16.mxu0 0
  %223 = vmatpush1.bf16.msra.mxu0 0
  %224 = vmatprep.subr.bf16.mxu0 0
  %225 = vmatpush1.bf16.msra.mxu0 0
  %226 = vmatprep.subr.bf16.mxu0 0
  %227 = vmatpush1.bf16.msra.mxu0 0
  %228 = vmatprep.subr.bf16.mxu0 0
  %229 = vmatpush1.bf16.msra.mxu0 0
  %230 = vmatprep.subr.bf16.mxu0 0
  %231 = vmatpush1.bf16.msra.mxu0 0
  %232 = vmatprep.subr.bf16.mxu0 0
  %233 = vmatpush1.bf16.msra.mxu0 0
  %234 = vmatprep.subr.bf16.mxu0 0
  %235 = vmatpush1.bf16.msra.mxu0 0
  %236 = vmatprep.subr.bf16.mxu0 0
  %237 = vmatpush1.bf16.msra.mxu0 0
  %238 = vmatprep.mubr.bf16.mxu0 0
  %239 = vmatmul.mubr.bf16.gmra.mrb[0].mxu0 %v197
  %v240 = vpop.f32.mrb[0].mxu0
  %v241 = vadd.f32 %v188, %v240
  %v242 = vpop.f32.mrb[0].mxu0
  %v243 = vpop.f32.mrb[0].mxu0
  %v244 = vadd.f32 %v188, %v243
  %v245 = vpop.f32.mrb[0].mxu0
  %246 = vmatprep.mubr.bf16.mxu0 0
  %247 = vmatmul.mubr.bf16.gmra.mrb[0].mxu0 %v200
  %v248 = vpop.f32.mrb[0].mxu0
  %v249 = vadd.f32 %v188, %v248
  %v250 = vpop.f32.mrb[0].mxu0
  %v251 = vpop.f32.mrb[0].mxu0
  %v252 = vadd.f32 %v188, %v251
  %v253 = vpop.f32.mrb[0].mxu0
  %254 = vdwg.mxu0
  %v255 = vld [vmem:[%s5] sm:$0x3]
  %v256 = vlaneseq
  %v257 = vshrl.u32 %v256, 7
  %v258 = vsub.s32 0, %v257
  %v259 = vrot.slane %v255, %v258
  %v260 = vmul.f32 %v241, %v259
  %v261 = vmul.f32 %v244, %v259
  %v262 = vmul.f32 %v249, %v259
  %v263 = vmul.f32 %v252, %v259
  %v264 = vlaneseq
  %v265 = vshrl.u32 %v264, 7
  %v266 = vsub.s32 1, %v265
  %v267 = vrot.slane %v255, %v266
  %v268 = vadd.f32 %v260, %v267
  %v269 = vadd.f32 %v261, %v267
  %v270 = vadd.f32 %v262, %v267
  %v271 = vadd.f32 %v263, %v267
  %v272 = vmax.f32 %v268, 0.0
  %v273 = vmax.f32 %v269, 0.0
  %v274 = vmax.f32 %v270, 0.0
  %v275 = vmax.f32 %v271, 0.0
  %v276 = vrot.slane %v272, 7
  %v277 = vrot.slane %v273, 7
  %v278 = vrot.slane %v274, 7
  %v279 = vrot.slane %v275, 7
  %v280 = vsel %vm75, %v278, %v279
  %v281 = vsel %vm75, %v277, %v278
  %v282 = vsel %vm75, %v276, %v277
  %v283 = vsel %vm75, %v279, %v276
  %v284 = vmul.f32 %v283, %v83
  %v285 = vmul.f32 %v282, %v88
  %v286 = vmul.f32 %v281, %v93
  %v287 = vmul.f32 %v280, %v98
  %v288 = vrot.slane %v272, 1
  %v289 = vrot.slane %v273, 1
  %v290 = vrot.slane %v274, 1
  %v291 = vrot.slane %v275, 1
  %v292 = vsel %vm108, %v290, %v291
  %v293 = vsel %vm108, %v289, %v290
  %v294 = vsel %vm108, %v288, %v289
  %v295 = vsel %vm108, %v291, %v288
  %v296 = vmul.f32 %v294, %v116
  %v297 = vmul.f32 %v293, %v121
  %v298 = vmul.f32 %v292, %v126
  %v299 = vmul.f32 %v295, %v131
  %304 = vrot.lane.b32.xlu0 %v272, 40
  %v305 = vpop.permute.xlu0 %304
  %306 = vrot.lane.b32.xlu0 %v273, 40
  %v307 = vpop.permute.xlu0 %306
  %308 = vrot.lane.b32.xlu0 %v274, 40
  %v309 = vpop.permute.xlu0 %308
  %310 = vrot.lane.b32.xlu0 %v275, 40
  %v311 = vpop.permute.xlu0 %310
  %320 = vrot.lane.b32.xlu0 %v296, 80
  %v321 = vpop.permute.xlu0 %320
  %322 = vrot.lane.b32.xlu0 %v297, 80
  %v323 = vpop.permute.xlu0 %322
  %324 = vrot.lane.b32.xlu0 %v298, 80
  %v325 = vpop.permute.xlu0 %324
  %326 = vrot.lane.b32.xlu0 %v299, 80
  %v327 = vpop.permute.xlu0 %326
  %vm332 = vcmask 326656
  %v333 = vsel %vm332, %v284, %v305
  %v334 = vsel %vm332, %v285, %v307
  %v335 = vsel %vm332, %v286, %v309
  %v336 = vsel %vm332, %v287, %v311
  %vm337 = vcmask 654336
  %v338 = vsel %vm337, %v333, %v321
  %v339 = vsel %vm337, %v334, %v323
  %v340 = vsel %vm337, %v335, %v325
  %v341 = vsel %vm337, %v336, %v327
  %v342 = vpack.c.bf16 %v339, %v338
  %v343 = vpack.c.bf16 %v341, %v340
  %v344 = vld [vmem:[%s6] sm:$0xf]
  %v345 = vld [vmem:[%s6 + $0x4] sm:$0xf]
  %v346 = vld [vmem:[%s6 + $0x8] sm:$0xf]
  %v347 = vld [vmem:[%s6 + $0xc] sm:$0xf]
  %v348 = vld [vmem:[%s6 + $0x10] sm:$0xf]
  %v349 = vld [vmem:[%s6 + $0x14] sm:$0xf]
  %v350 = vld [vmem:[%s6 + $0x18] sm:$0xf]
  %v351 = vld [vmem:[%s6 + $0x1c] sm:$0xf]
  %v352 = vld [vmem:[%s6 + $0x20] sm:$0xf]
  %v353 = vld [vmem:[%s6 + $0x24] sm:$0xf]
  %v354 = vld [vmem:[%s6 + $0x28] sm:$0xf]
  %v355 = vld [vmem:[%s6 + $0x2c] sm:$0xf]
  %v356 = vld [vmem:[%s6 + $0x30] sm:$0xf]
  %v357 = vld [vmem:[%s6 + $0x34] sm:$0xf]
  %v358 = vld [vmem:[%s6 + $0x38] sm:$0xf]
  %v359 = vld [vmem:[%s7] sm:$0x1]
  %v361 = vlaneseq
  %v362 = vshrl.u32 %v361, 7
  %v363 = vsub.s32 0, %v362
  %v364 = vrot.slane %v359, %v363
  %v381 = vunpack.c.l.b16 %v344
  %v382 = vunpack.c.l.b16 %v345
  %v383 = vunpack.c.l.b16 %v346
  %v384 = vunpack.c.l.b16 %v347
  %v385 = vunpack.c.l.b16 %v348
  %v386 = vunpack.c.l.b16 %v349
  %v387 = vunpack.c.l.b16 %v350
  %v388 = vunpack.c.l.b16 %v351
  %v389 = vunpack.c.l.b16 %v352
  %v390 = vunpack.c.l.b16 %v353
  %v391 = vunpack.c.l.b16 %v354
  %v392 = vunpack.c.l.b16 %v355
  %v393 = vunpack.c.l.b16 %v356
  %v394 = vunpack.c.l.b16 %v357
  %v395 = vunpack.c.l.b16 %v358
  %v396 = vpack.c.b16 %v382, %v381
  %v397 = vpack.c.b16 %v384, %v383
  %v398 = vpack.c.b16 %v386, %v385
  %v399 = vpack.c.b16 %v388, %v387
  %v400 = vpack.c.b16 %v390, %v389
  %v401 = vpack.c.b16 %v392, %v391
  %v402 = vpack.c.b16 %v394, %v393
  %v403 = vpack.c.b16 %v395, %v395
  %vm411 = vcmask 982016
  %v413 = vsel %vm411, %v342, 0
  %v416 = vsel %vm411, %v343, 0
  %vm418 = vcmask 1043456
  %v420 = vsel %vm418, %v403, 0
  %422 = vmatprep.subr.bf16.mxu0 0
  %423 = vmatpush1.bf16.msra.mxu0 %v396
  %424 = vmatprep.subr.bf16.mxu0 0
  %425 = vmatpush1.bf16.msra.mxu0 %v397
  %426 = vmatprep.subr.bf16.mxu0 0
  %427 = vmatpush1.bf16.msra.mxu0 %v398
  %428 = vmatprep.subr.bf16.mxu0 0
  %429 = vmatpush1.bf16.msra.mxu0 %v399
  %430 = vmatprep.subr.bf16.mxu0 0
  %431 = vmatpush1.bf16.msra.mxu0 %v400
  %432 = vmatprep.subr.bf16.mxu0 0
  %433 = vmatpush1.bf16.msra.mxu0 %v401
  %434 = vmatprep.subr.bf16.mxu0 0
  %435 = vmatpush1.bf16.msra.mxu0 %v402
  %436 = vmatprep.subr.bf16.mxu0 0
  %437 = vmatpush1.bf16.msra.mxu0 %v420
  %438 = vmatprep.subr.bf16.mxu0 0
  %439 = vmatpush1.bf16.msra.mxu0 0
  %440 = vmatprep.subr.bf16.mxu0 0
  %441 = vmatpush1.bf16.msra.mxu0 0
  %442 = vmatprep.subr.bf16.mxu0 0
  %443 = vmatpush1.bf16.msra.mxu0 0
  %444 = vmatprep.subr.bf16.mxu0 0
  %445 = vmatpush1.bf16.msra.mxu0 0
  %446 = vmatprep.subr.bf16.mxu0 0
  %447 = vmatpush1.bf16.msra.mxu0 0
  %448 = vmatprep.subr.bf16.mxu0 0
  %449 = vmatpush1.bf16.msra.mxu0 0
  %450 = vmatprep.subr.bf16.mxu0 0
  %451 = vmatpush1.bf16.msra.mxu0 0
  %452 = vmatprep.subr.bf16.mxu0 0
  %453 = vmatpush1.bf16.msra.mxu0 0
  %454 = vmatprep.mubr.bf16.mxu0 0
  %455 = vmatmul.mubr.bf16.gmra.mrb[0].mxu0 %v413
  %v456 = vpop.f32.mrb[0].mxu0
  %v457 = vadd.f32 %v364, %v456
  %v458 = vpop.f32.mrb[0].mxu0
  %v459 = vpop.f32.mrb[0].mxu0
  %v460 = vadd.f32 %v364, %v459
  %v461 = vpop.f32.mrb[0].mxu0
  %462 = vmatprep.mubr.bf16.mxu0 0
  %463 = vmatmul.mubr.bf16.gmra.mrb[0].mxu0 %v416
  %v464 = vpop.f32.mrb[0].mxu0
  %v465 = vadd.f32 %v364, %v464
  %v466 = vpop.f32.mrb[0].mxu0
  %v467 = vpop.f32.mrb[0].mxu0
  %v468 = vadd.f32 %v364, %v467
  %v469 = vpop.f32.mrb[0].mxu0
  %470 = vdwg.mxu0
  %v471 = vadd.f32 %v241, %v457
  %v472 = vadd.f32 %v244, %v460
  %v473 = vadd.f32 %v249, %v465
  %v474 = vadd.f32 %v252, %v468
  %v475 = vld [vmem:[%s8] sm:$0x3]
  %v476 = vlaneseq
  %v477 = vshrl.u32 %v476, 7
  %v478 = vsub.s32 0, %v477
  %v479 = vrot.slane %v475, %v478
  %v480 = vmul.f32 %v471, %v479
  %v481 = vmul.f32 %v472, %v479
  %v482 = vmul.f32 %v473, %v479
  %v483 = vmul.f32 %v474, %v479
  %v484 = vlaneseq
  %v485 = vshrl.u32 %v484, 7
  %v486 = vsub.s32 1, %v485
  %v487 = vrot.slane %v475, %v486
  %v488 = vadd.f32 %v480, %v487
  %v489 = vadd.f32 %v481, %v487
  %v490 = vadd.f32 %v482, %v487
  %v491 = vadd.f32 %v483, %v487
  %v492 = vmax.f32 %v488, 0.0
  %v493 = vmax.f32 %v489, 0.0
  %v494 = vmax.f32 %v490, 0.0
  %v495 = vmax.f32 %v491, 0.0
  %v496 = vrot.slane %v492, 7
  %v497 = vrot.slane %v493, 7
  %v498 = vrot.slane %v494, 7
  %v499 = vrot.slane %v495, 7
  %v500 = vsel %vm75, %v498, %v499
  %v501 = vsel %vm75, %v497, %v498
  %v502 = vsel %vm75, %v496, %v497
  %v503 = vsel %vm75, %v499, %v496
  %v504 = vmul.f32 %v503, %v83
  %v505 = vmul.f32 %v502, %v88
  %v506 = vmul.f32 %v501, %v93
  %v507 = vmul.f32 %v500, %v98
  %v508 = vrot.slane %v492, 1
  %v509 = vrot.slane %v493, 1
  %v510 = vrot.slane %v494, 1
  %v511 = vrot.slane %v495, 1
  %v512 = vsel %vm108, %v510, %v511
  %v513 = vsel %vm108, %v509, %v510
  %v514 = vsel %vm108, %v508, %v509
  %v515 = vsel %vm108, %v511, %v508
  %v516 = vmul.f32 %v514, %v116
  %v517 = vmul.f32 %v513, %v121
  %v518 = vmul.f32 %v512, %v126
  %v519 = vmul.f32 %v515, %v131
  %524 = vrot.lane.b32.xlu0 %v492, 40
  %v525 = vpop.permute.xlu0 %524
  %526 = vrot.lane.b32.xlu0 %v493, 40
  %v527 = vpop.permute.xlu0 %526
  %528 = vrot.lane.b32.xlu0 %v494, 40
  %v529 = vpop.permute.xlu0 %528
  %530 = vrot.lane.b32.xlu0 %v495, 40
  %v531 = vpop.permute.xlu0 %530
  %540 = vrot.lane.b32.xlu0 %v516, 80
  %v541 = vpop.permute.xlu0 %540
  %542 = vrot.lane.b32.xlu0 %v517, 80
  %v543 = vpop.permute.xlu0 %542
  %544 = vrot.lane.b32.xlu0 %v518, 80
  %v545 = vpop.permute.xlu0 %544
  %546 = vrot.lane.b32.xlu0 %v519, 80
  %v547 = vpop.permute.xlu0 %546
  %v552 = vsel %vm332, %v504, %v525
  %v553 = vsel %vm332, %v505, %v527
  %v554 = vsel %vm332, %v506, %v529
  %v555 = vsel %vm332, %v507, %v531
  %v556 = vsel %vm337, %v552, %v541
  %v557 = vsel %vm337, %v553, %v543
  %v558 = vsel %vm337, %v554, %v545
  %v559 = vsel %vm337, %v555, %v547
  %v560 = vpack.c.bf16 %v557, %v556
  %v561 = vpack.c.bf16 %v559, %v558
  %v562 = vld [vmem:[%s9] sm:$0xf]
  %v563 = vld [vmem:[%s9 + $0x4] sm:$0xf]
  %v564 = vld [vmem:[%s9 + $0x8] sm:$0xf]
  %v565 = vld [vmem:[%s9 + $0xc] sm:$0xf]
  %v566 = vld [vmem:[%s9 + $0x10] sm:$0xf]
  %v567 = vld [vmem:[%s9 + $0x14] sm:$0xf]
  %v568 = vld [vmem:[%s9 + $0x18] sm:$0xf]
  %v569 = vld [vmem:[%s9 + $0x1c] sm:$0xf]
  %v570 = vld [vmem:[%s9 + $0x20] sm:$0xf]
  %v571 = vld [vmem:[%s9 + $0x24] sm:$0xf]
  %v572 = vld [vmem:[%s9 + $0x28] sm:$0xf]
  %v573 = vld [vmem:[%s9 + $0x2c] sm:$0xf]
  %v574 = vld [vmem:[%s9 + $0x30] sm:$0xf]
  %v575 = vld [vmem:[%s9 + $0x34] sm:$0xf]
  %v576 = vld [vmem:[%s9 + $0x38] sm:$0xf]
  %v577 = vld [vmem:[%s10] sm:$0x1]
  %v579 = vlaneseq
  %v580 = vshrl.u32 %v579, 7
  %v581 = vsub.s32 0, %v580
  %v582 = vrot.slane %v577, %v581
  %v599 = vunpack.c.l.b16 %v562
  %v600 = vunpack.c.l.b16 %v563
  %v601 = vunpack.c.l.b16 %v564
  %v602 = vunpack.c.l.b16 %v565
  %v603 = vunpack.c.l.b16 %v566
  %v604 = vunpack.c.l.b16 %v567
  %v605 = vunpack.c.l.b16 %v568
  %v606 = vunpack.c.l.b16 %v569
  %v607 = vunpack.c.l.b16 %v570
  %v608 = vunpack.c.l.b16 %v571
  %v609 = vunpack.c.l.b16 %v572
  %v610 = vunpack.c.l.b16 %v573
  %v611 = vunpack.c.l.b16 %v574
  %v612 = vunpack.c.l.b16 %v575
  %v613 = vunpack.c.l.b16 %v576
  %v614 = vpack.c.b16 %v600, %v599
  %v615 = vpack.c.b16 %v602, %v601
  %v616 = vpack.c.b16 %v604, %v603
  %v617 = vpack.c.b16 %v606, %v605
  %v618 = vpack.c.b16 %v608, %v607
  %v619 = vpack.c.b16 %v610, %v609
  %v620 = vpack.c.b16 %v612, %v611
  %v621 = vpack.c.b16 %v613, %v613
  %v630 = vsel %vm411, %v560, 0
  %v633 = vsel %vm411, %v561, 0
  %v636 = vsel %vm418, %v621, 0
  %638 = vmatprep.subr.bf16.mxu0 0
  %639 = vmatpush1.bf16.msra.mxu0 %v614
  %640 = vmatprep.subr.bf16.mxu0 0
  %641 = vmatpush1.bf16.msra.mxu0 %v615
  %642 = vmatprep.subr.bf16.mxu0 0
  %643 = vmatpush1.bf16.msra.mxu0 %v616
  %644 = vmatprep.subr.bf16.mxu0 0
  %645 = vmatpush1.bf16.msra.mxu0 %v617
  %646 = vmatprep.subr.bf16.mxu0 0
  %647 = vmatpush1.bf16.msra.mxu0 %v618
  %648 = vmatprep.subr.bf16.mxu0 0
  %649 = vmatpush1.bf16.msra.mxu0 %v619
  %650 = vmatprep.subr.bf16.mxu0 0
  %651 = vmatpush1.bf16.msra.mxu0 %v620
  %652 = vmatprep.subr.bf16.mxu0 0
  %653 = vmatpush1.bf16.msra.mxu0 %v636
  %654 = vmatprep.subr.bf16.mxu0 0
  %655 = vmatpush1.bf16.msra.mxu0 0
  %656 = vmatprep.subr.bf16.mxu0 0
  %657 = vmatpush1.bf16.msra.mxu0 0
  %658 = vmatprep.subr.bf16.mxu0 0
  %659 = vmatpush1.bf16.msra.mxu0 0
  %660 = vmatprep.subr.bf16.mxu0 0
  %661 = vmatpush1.bf16.msra.mxu0 0
  %662 = vmatprep.subr.bf16.mxu0 0
  %663 = vmatpush1.bf16.msra.mxu0 0
  %664 = vmatprep.subr.bf16.mxu0 0
  %665 = vmatpush1.bf16.msra.mxu0 0
  %666 = vmatprep.subr.bf16.mxu0 0
  %667 = vmatpush1.bf16.msra.mxu0 0
  %668 = vmatprep.subr.bf16.mxu0 0
  %669 = vmatpush1.bf16.msra.mxu0 0
  %670 = vmatprep.mubr.bf16.mxu0 0
  %671 = vmatmul.mubr.bf16.gmra.mrb[0].mxu0 %v630
  %v672 = vpop.f32.mrb[0].mxu0
  %v673 = vadd.f32 %v582, %v672
  %v674 = vpop.f32.mrb[0].mxu0
  %v675 = vpop.f32.mrb[0].mxu0
  %v676 = vadd.f32 %v582, %v675
  %v677 = vpop.f32.mrb[0].mxu0
  %678 = vmatprep.mubr.bf16.mxu0 0
  %679 = vmatmul.mubr.bf16.gmra.mrb[0].mxu0 %v633
  %v680 = vpop.f32.mrb[0].mxu0
  %v681 = vadd.f32 %v582, %v680
  %v682 = vpop.f32.mrb[0].mxu0
  %v683 = vpop.f32.mrb[0].mxu0
  %v684 = vadd.f32 %v582, %v683
  %v685 = vpop.f32.mrb[0].mxu0
  %686 = vdwg.mxu0
  %v687 = vadd.f32 %v471, %v673
  %v688 = vadd.f32 %v472, %v676
  %v689 = vadd.f32 %v473, %v681
  %v690 = vadd.f32 %v474, %v684
  %v691 = vld [vmem:[%s11] sm:$0x3]
  %v692 = vlaneseq
  %v693 = vshrl.u32 %v692, 7
  %v694 = vsub.s32 0, %v693
  %v695 = vrot.slane %v691, %v694
  %v696 = vmul.f32 %v687, %v695
  %v697 = vmul.f32 %v688, %v695
  %v698 = vmul.f32 %v689, %v695
  %v699 = vmul.f32 %v690, %v695
  %v700 = vlaneseq
  %v701 = vshrl.u32 %v700, 7
  %v702 = vsub.s32 1, %v701
  %v703 = vrot.slane %v691, %v702
  %v704 = vadd.f32 %v696, %v703
  %v705 = vadd.f32 %v697, %v703
  %v706 = vadd.f32 %v698, %v703
  %v707 = vadd.f32 %v699, %v703
  %v708 = vmax.f32 %v704, 0.0
  %v709 = vmax.f32 %v705, 0.0
  %v710 = vmax.f32 %v706, 0.0
  %v711 = vmax.f32 %v707, 0.0
  %v712 = vrot.slane %v708, 7
  %v713 = vrot.slane %v709, 7
  %v714 = vrot.slane %v710, 7
  %v715 = vrot.slane %v711, 7
  %v716 = vsel %vm75, %v714, %v715
  %v717 = vsel %vm75, %v713, %v714
  %v718 = vsel %vm75, %v712, %v713
  %v719 = vsel %vm75, %v715, %v712
  %v720 = vmul.f32 %v719, %v83
  %v721 = vmul.f32 %v718, %v88
  %v722 = vmul.f32 %v717, %v93
  %v723 = vmul.f32 %v716, %v98
  %v724 = vrot.slane %v708, 1
  %v725 = vrot.slane %v709, 1
  %v726 = vrot.slane %v710, 1
  %v727 = vrot.slane %v711, 1
  %v728 = vsel %vm108, %v726, %v727
  %v729 = vsel %vm108, %v725, %v726
  %v730 = vsel %vm108, %v724, %v725
  %v731 = vsel %vm108, %v727, %v724
  %v732 = vmul.f32 %v730, %v116
  %v733 = vmul.f32 %v729, %v121
  %v734 = vmul.f32 %v728, %v126
  %v735 = vmul.f32 %v731, %v131
  %740 = vrot.lane.b32.xlu0 %v708, 40
  %v741 = vpop.permute.xlu0 %740
  %742 = vrot.lane.b32.xlu0 %v709, 40
  %v743 = vpop.permute.xlu0 %742
  %744 = vrot.lane.b32.xlu0 %v710, 40
  %v745 = vpop.permute.xlu0 %744
  %746 = vrot.lane.b32.xlu0 %v711, 40
  %v747 = vpop.permute.xlu0 %746
  %756 = vrot.lane.b32.xlu0 %v732, 80
  %v757 = vpop.permute.xlu0 %756
  %758 = vrot.lane.b32.xlu0 %v733, 80
  %v759 = vpop.permute.xlu0 %758
  %760 = vrot.lane.b32.xlu0 %v734, 80
  %v761 = vpop.permute.xlu0 %760
  %762 = vrot.lane.b32.xlu0 %v735, 80
  %v763 = vpop.permute.xlu0 %762
  %v768 = vsel %vm332, %v720, %v741
  %v769 = vsel %vm332, %v721, %v743
  %v770 = vsel %vm332, %v722, %v745
  %v771 = vsel %vm332, %v723, %v747
  %v772 = vsel %vm337, %v768, %v757
  %v773 = vsel %vm337, %v769, %v759
  %v774 = vsel %vm337, %v770, %v761
  %v775 = vsel %vm337, %v771, %v763
  %v776 = vpack.c.bf16 %v773, %v772
  %v777 = vpack.c.bf16 %v775, %v774
  %v778 = vld [vmem:[%s12] sm:$0xf]
  %v779 = vld [vmem:[%s12 + $0x4] sm:$0xf]
  %v780 = vld [vmem:[%s12 + $0x8] sm:$0xf]
  %v781 = vld [vmem:[%s12 + $0xc] sm:$0xf]
  %v782 = vld [vmem:[%s12 + $0x10] sm:$0xf]
  %v783 = vld [vmem:[%s12 + $0x14] sm:$0xf]
  %v784 = vld [vmem:[%s12 + $0x18] sm:$0xf]
  %v785 = vld [vmem:[%s12 + $0x1c] sm:$0xf]
  %v786 = vld [vmem:[%s12 + $0x20] sm:$0xf]
  %v787 = vld [vmem:[%s12 + $0x24] sm:$0xf]
  %v788 = vld [vmem:[%s12 + $0x28] sm:$0xf]
  %v789 = vld [vmem:[%s12 + $0x2c] sm:$0xf]
  %v790 = vld [vmem:[%s12 + $0x30] sm:$0xf]
  %v791 = vld [vmem:[%s12 + $0x34] sm:$0xf]
  %v792 = vld [vmem:[%s12 + $0x38] sm:$0xf]
  %v793 = vld [vmem:[%s13] sm:$0x1]
  %v795 = vlaneseq
  %v796 = vshrl.u32 %v795, 7
  %v797 = vsub.s32 0, %v796
  %v798 = vrot.slane %v793, %v797
  %v815 = vunpack.c.l.b16 %v778
  %v816 = vunpack.c.l.b16 %v779
  %v817 = vunpack.c.l.b16 %v780
  %v818 = vunpack.c.l.b16 %v781
  %v819 = vunpack.c.l.b16 %v782
  %v820 = vunpack.c.l.b16 %v783
  %v821 = vunpack.c.l.b16 %v784
  %v822 = vunpack.c.l.b16 %v785
  %v823 = vunpack.c.l.b16 %v786
  %v824 = vunpack.c.l.b16 %v787
  %v825 = vunpack.c.l.b16 %v788
  %v826 = vunpack.c.l.b16 %v789
  %v827 = vunpack.c.l.b16 %v790
  %v828 = vunpack.c.l.b16 %v791
  %v829 = vunpack.c.l.b16 %v792
  %v830 = vpack.c.b16 %v816, %v815
  %v831 = vpack.c.b16 %v818, %v817
  %v832 = vpack.c.b16 %v820, %v819
  %v833 = vpack.c.b16 %v822, %v821
  %v834 = vpack.c.b16 %v824, %v823
  %v835 = vpack.c.b16 %v826, %v825
  %v836 = vpack.c.b16 %v828, %v827
  %v837 = vpack.c.b16 %v829, %v829
  %v846 = vsel %vm411, %v776, 0
  %v849 = vsel %vm411, %v777, 0
  %v852 = vsel %vm418, %v837, 0
  %854 = vmatprep.subr.bf16.mxu0 0
  %855 = vmatpush1.bf16.msra.mxu0 %v830
  %856 = vmatprep.subr.bf16.mxu0 0
  %857 = vmatpush1.bf16.msra.mxu0 %v831
  %858 = vmatprep.subr.bf16.mxu0 0
  %859 = vmatpush1.bf16.msra.mxu0 %v832
  %860 = vmatprep.subr.bf16.mxu0 0
  %861 = vmatpush1.bf16.msra.mxu0 %v833
  %862 = vmatprep.subr.bf16.mxu0 0
  %863 = vmatpush1.bf16.msra.mxu0 %v834
  %864 = vmatprep.subr.bf16.mxu0 0
  %865 = vmatpush1.bf16.msra.mxu0 %v835
  %866 = vmatprep.subr.bf16.mxu0 0
  %867 = vmatpush1.bf16.msra.mxu0 %v836
  %868 = vmatprep.subr.bf16.mxu0 0
  %869 = vmatpush1.bf16.msra.mxu0 %v852
  %870 = vmatprep.subr.bf16.mxu0 0
  %871 = vmatpush1.bf16.msra.mxu0 0
  %872 = vmatprep.subr.bf16.mxu0 0
  %873 = vmatpush1.bf16.msra.mxu0 0
  %874 = vmatprep.subr.bf16.mxu0 0
  %875 = vmatpush1.bf16.msra.mxu0 0
  %876 = vmatprep.subr.bf16.mxu0 0
  %877 = vmatpush1.bf16.msra.mxu0 0
  %878 = vmatprep.subr.bf16.mxu0 0
  %879 = vmatpush1.bf16.msra.mxu0 0
  %880 = vmatprep.subr.bf16.mxu0 0
  %881 = vmatpush1.bf16.msra.mxu0 0
  %882 = vmatprep.subr.bf16.mxu0 0
  %883 = vmatpush1.bf16.msra.mxu0 0
  %884 = vmatprep.subr.bf16.mxu0 0
  %885 = vmatpush1.bf16.msra.mxu0 0
  %886 = vmatprep.mubr.bf16.mxu0 0
  %887 = vmatmul.mubr.bf16.gmra.mrb[0].mxu0 %v846
  %v888 = vpop.f32.mrb[0].mxu0
  %v889 = vadd.f32 %v798, %v888
  %v890 = vpop.f32.mrb[0].mxu0
  %v891 = vpop.f32.mrb[0].mxu0
  %v892 = vadd.f32 %v798, %v891
  %v893 = vpop.f32.mrb[0].mxu0
  %894 = vmatprep.mubr.bf16.mxu0 0
  %895 = vmatmul.mubr.bf16.gmra.mrb[0].mxu0 %v849
  %v896 = vpop.f32.mrb[0].mxu0
  %v897 = vadd.f32 %v798, %v896
  %v898 = vpop.f32.mrb[0].mxu0
  %v899 = vpop.f32.mrb[0].mxu0
  %v900 = vadd.f32 %v798, %v899
  %v901 = vpop.f32.mrb[0].mxu0
  %902 = vdwg.mxu0
  %v903 = vadd.f32 %v687, %v889
  %v904 = vadd.f32 %v688, %v892
  %v905 = vadd.f32 %v689, %v897
  %v906 = vadd.f32 %v690, %v900
  %v907 = vld [vmem:[%s14] sm:$0x3]
  %v908 = vlaneseq
  %v909 = vshrl.u32 %v908, 7
  %v910 = vsub.s32 0, %v909
  %v911 = vrot.slane %v907, %v910
  %v912 = vmul.f32 %v903, %v911
  %v913 = vmul.f32 %v904, %v911
  %v914 = vmul.f32 %v905, %v911
  %v915 = vmul.f32 %v906, %v911
  %v916 = vlaneseq
  %v917 = vshrl.u32 %v916, 7
  %v918 = vsub.s32 1, %v917
  %v919 = vrot.slane %v907, %v918
  %v920 = vadd.f32 %v912, %v919
  %v921 = vadd.f32 %v913, %v919
  %v922 = vadd.f32 %v914, %v919
  %v923 = vadd.f32 %v915, %v919
  %v924 = vmax.f32 %v920, 0.0
  %v925 = vmax.f32 %v921, 0.0
  %v926 = vmax.f32 %v922, 0.0
  %v927 = vmax.f32 %v923, 0.0
  %v928 = vsel %vm332, %v924, 0.0
  %v929 = vsel %vm332, %v925, 0.0
  %v930 = vadd.f32 %v928, %v929
  %v931 = vrot.slane %v930, 4
  %v932 = vadd.f32 %v930, %v931
  %v933 = vrot.slane %v932, 2
  %v934 = vadd.f32 %v932, %v933
  %v935 = vrot.slane %v934, 1
  %v936 = vadd.f32 %v934, %v935
  %v937 = vsel %vm332, %v926, 0.0
  %v938 = vsel %vm332, %v927, 0.0
  %v939 = vadd.f32 %v937, %v938
  %v940 = vrot.slane %v939, 4
  %v941 = vadd.f32 %v939, %v940
  %v942 = vrot.slane %v941, 2
  %v943 = vadd.f32 %v941, %v942
  %v944 = vrot.slane %v943, 1
  %v945 = vadd.f32 %v943, %v944
  %v946 = vmul.f32 %v936, 0.0625
  %v947 = vmul.f32 %v945, 0.0625
  %v948 = vpack.c.bf16 %v946, %v946
  %v949 = vpack.c.bf16 %v947, %v947
  %v950 = vld [vmem:[%s15] sm:$0xf]
  %v951 = vld [vmem:[%s15 + $0x4] sm:$0xf]
  %v952 = vld [vmem:[%s15 + $0x8] sm:$0xf]
  %v953 = vld [vmem:[%s15 + $0xc] sm:$0xf]
  %v954 = vld [vmem:[%s15 + $0x10] sm:$0xf]
  %v955 = vld [vmem:[%s16] sm:$0x1]
  %v957 = vlaneseq
  %v958 = vshrl.u32 %v957, 7
  %v959 = vsub.s32 0, %v958
  %v960 = vrot.slane %v955, %v959
  %v964 = vunpack.c.l.b16 %v948
  %v965 = vunpack.c.l.b16 %v949
  %vm966 = vcmask 1041409
  %v967 = vsel %vm966, %v965, %v964
  %v968 = vpack.c.b16 %v967, %v967
  %v974 = vunpack.c.l.b16 %v950
  %v975 = vunpack.c.l.b16 %v951
  %v976 = vunpack.c.l.b16 %v952
  %v977 = vunpack.c.l.b16 %v953
  %v978 = vunpack.c.l.b16 %v954
  %v979 = vpack.c.b16 %v975, %v974
  %v980 = vpack.c.b16 %v977, %v976
  %v981 = vpack.c.b16 %v978, %v978
  %v985 = vsel %vm332, %v968, 0
  %v988 = vsel %vm418, %v981, 0
  %990 = vmatprep.subr.bf16.mxu0 0
  %991 = vmatpush1.bf16.msra.mxu0 %v979
  %992 = vmatprep.subr.bf16.mxu0 0
  %993 = vmatpush1.bf16.msra.mxu0 %v980
  %994 = vmatprep.subr.bf16.mxu0 0
  %995 = vmatpush1.bf16.msra.mxu0 %v988
  %996 = vmatprep.subr.bf16.mxu0 0
  %997 = vmatpush1.bf16.msra.mxu0 0
  %998 = vmatprep.subr.bf16.mxu0 0
  %999 = vmatpush1.bf16.msra.mxu0 0
  %1000 = vmatprep.subr.bf16.mxu0 0
  %1001 = vmatpush1.bf16.msra.mxu0 0
  %1002 = vmatprep.subr.bf16.mxu0 0
  %1003 = vmatpush1.bf16.msra.mxu0 0
  %1004 = vmatprep.subr.bf16.mxu0 0
  %1005 = vmatpush1.bf16.msra.mxu0 0
  %1006 = vmatprep.subr.bf16.mxu0 0
  %1007 = vmatpush1.bf16.msra.mxu0 0
  %1008 = vmatprep.subr.bf16.mxu0 0
  %1009 = vmatpush1.bf16.msra.mxu0 0
  %1010 = vmatprep.subr.bf16.mxu0 0
  %1011 = vmatpush1.bf16.msra.mxu0 0
  %1012 = vmatprep.subr.bf16.mxu0 0
  %1013 = vmatpush1.bf16.msra.mxu0 0
  %1014 = vmatprep.subr.bf16.mxu0 0
  %1015 = vmatpush1.bf16.msra.mxu0 0
  %1016 = vmatprep.subr.bf16.mxu0 0
  %1017 = vmatpush1.bf16.msra.mxu0 0
  %1018 = vmatprep.subr.bf16.mxu0 0
  %1019 = vmatpush1.bf16.msra.mxu0 0
  %1020 = vmatprep.subr.bf16.mxu0 0
  %1021 = vmatpush1.bf16.msra.mxu0 0
  %1022 = vmatprep.mubr.bf16.mxu0 0
  %1023 = vmatmul.mubr.bf16.gmra.mrb[0].mxu0 %v985
  %v1024 = vpop.f32.mrb[0].mxu0
  %v1025 = vadd.f32 %v960, %v1024
  %v1026 = vpop.f32.mrb[0].mxu0
  %v1027 = vpop.f32.mrb[0].mxu0
  %v1028 = vpop.f32.mrb[0].mxu0
  %1029 = vdwg.mxu0
  %vm1030 = vcmask 33792
  %1031 = vst.msk [vmem:[%s17] sm:$0x3] %vm1030, %v1025
  // Predicated region
  $region70: #{multitask_densenet_forward.1} parent=0 // pred_check
    _
  $region71: #{multitask_densenet_forward.1} parent=0 // pred_check_branch
    %1033 = sbr.rel (0) target = $region73
  $region72: #{multitask_densenet_forward.1} parent=0 // pred_region
    _
  $region73: #{multitask_densenet_forward.1} parent=0 // pred_fallthru
    _
  // Predicated region
  $region74: #{multitask_densenet_forward.1} parent=0 // pred_check
    _
  $region75: #{multitask_densenet_forward.1} parent=0 // pred_check_branch
    %1035 = sbr.rel (0) target = $region77
  $region76: #{multitask_densenet_forward.1} parent=0 // pred_region
    _
  $region77: #{multitask_densenet_forward.1} parent=0 // pred_fallthru
    _

</llo_original>
